<compile_context>
chip_gen: v7x
topology: tpu7x:2x2x1
jax: 0.10.0
libtpu: 0.0.40
codegen_flags: <defaults>
</compile_context>

<pallas_src>
import jax
import jax.numpy as jnp
from jax.experimental import pallas as pl
from jax.experimental.pallas import tpu as pltpu


def _cdiv(a: int, b: int) -> int:
    return -(-a // b)


def _round_up(x: int, m: int) -> int:
    return _cdiv(x, m) * m


def _sublane(dtype) -> int:
    # native sublane packing: 8 rows for 4-byte, 16 for 2-byte, 32 for 1-byte
    return {4: 8, 2: 16, 1: 32}.get(jnp.dtype(dtype).itemsize, 8)


def _usable_vmem_bytes() -> int:
    try:
        cap = int(pltpu.get_tpu_info().vmem_capacity_bytes)
    except Exception:
        cap = 64 * 1024 * 1024  # conservative (v7x per-TC size)
    # leave ~25% headroom for compiler scratch / pipelining
    return (cap * 3) // 4


# --------------------------- kernels ---------------------------------------


def _dense_bias_resident_kernel(x_ref, w_ref, b_ref, o_ref):
    # x_ref: (tm, K)  w_ref: (K, N) resident  b_ref: (1, N) f32  o_ref: (tm, N)
    acc = jnp.dot(x_ref[...], w_ref[...], preferred_element_type=jnp.float32)
    o_ref[...] = (acc + b_ref[...]).astype(o_ref.dtype)


def _dense_bias_tiled_kernel(x_ref, w_ref, b_ref, o_ref, acc_ref):
    # x_ref: (tm, tk)  w_ref: (tk, tn)  b_ref: (1, tn) f32
    # o_ref: (tm, tn)  acc_ref: (tm, tn) f32 scratch
    k = pl.program_id(2)

    @pl.when(k == 0)
    def _init():
        acc_ref[...] = jnp.zeros_like(acc_ref)

    acc_ref[...] += jnp.dot(
        x_ref[...], w_ref[...], preferred_element_type=jnp.float32
    )

    @pl.when(k == pl.num_programs(2) - 1)
    def _finalize():
        o_ref[...] = (acc_ref[...] + b_ref[...]).astype(o_ref.dtype)


# --------------------------- wrapper ----------------------------------------


def vit_output_no_skip(
    hidden_states,
    input_tensor,
    weight,
    bias,
    *,
    tm: int = 512,
    tn: int = 256,
    tk: int = 1024,
    compute_dtype=jnp.bfloat16,
    force_tiled: bool = False,
):
    """hidden_states: [B, S, K]; input_tensor: [B, S, N] (ignored, no skip).

    weight: [K, N] (already transposed vs. PyTorch's [N, K]); bias: [N].
    Returns [B, S, N] in hidden_states.dtype.
    """
    del input_tensor  # ViTOutputNoSkip has no residual skip
    # TODO(synk): dropout is identity here (eval-mode semantics); training-mode
    # dropout would need pltpu.prng_seed + pltpu.prng_random_bits masking.

    B, S, K = hidden_states.shape
    Kw, N = weight.shape
    assert Kw == K, "weight must be [intermediate_size, hidden_size]"
    M = B * S
    out_dtype = hidden_states.dtype

    x2d = hidden_states.reshape(M, K).astype(compute_dtype)
    w2d = weight.astype(compute_dtype)
    b2d = bias.reshape(1, N).astype(jnp.float32)

    act_b = jnp.dtype(compute_dtype).itemsize
    out_b = jnp.dtype(out_dtype).itemsize
    sub = max(_sublane(compute_dtype), _sublane(out_dtype))
    usable = _usable_vmem_bytes()

    cost = pl.CostEstimate(
        flops=2 * M * K * N,
        transcendentals=0,
        bytes_accessed=(M * K + K * N) * act_b + N * 4 + M * N * out_b,
    )

    # ---------------- resident-weight path (ViT-sized layers) ---------------
    def _resident_footprint(tm_: int) -> int:
        return (
            2 * tm_ * K * act_b      # double-buffered activation tile
            + 2 * K * N * act_b      # weight (constant index -> DMA'd once)
            + 2 * tm_ * N * out_b    # double-buffered output tile
            + 2 * N * 4              # bias row
        )

    tm_res = tm
    while tm_res > sub and _resident_footprint(tm_res) > usable:
        tm_res //= 2
    use_resident = (not force_tiled) and _resident_footprint(tm_res) <= usable

    if use_resident:
        # Load-balanced M tiling, no padding; prefer an even tile count so
        # v7x's two TensorCores get balanced shards.
        n_tiles = max(1, _cdiv(M, tm_res))
        if n_tiles > 1 and n_tiles % 2 == 1:
            n_tiles += 1
        tm_eff = _round_up(_cdiv(M, n_tiles), sub)
        if tm_eff >= M:
            tm_eff = M  # single block covering the full (possibly ragged) M
        grid_m = _cdiv(M, tm_eff)

        vmem_limit = int(
            min(max(_resident_footprint(tm_eff) * 5 // 4, 32 * 1024 * 1024), usable)
        )

        out2d = pl.pallas_call(
            _dense_bias_resident_kernel,
            out_shape=jax.ShapeDtypeStruct((M, N), out_dtype),
            grid_spec=pltpu.PrefetchScalarGridSpec(
                num_scalar_prefetch=0,
                grid=(grid_m,),
                in_specs=[
                    pl.BlockSpec((tm_eff, K), lambda i: (i, 0)),  # activations
                    pl.BlockSpec((K, N), lambda i: (0, 0)),       # resident weight
                    pl.BlockSpec((1, N), lambda i: (0, 0)),       # resident bias
                ],
                out_specs=pl.BlockSpec((tm_eff, N), lambda i: (i, 0)),
            ),
            compiler_params=pltpu.CompilerParams(
                dimension_semantics=("parallel",),
                vmem_limit_bytes=vmem_limit,
            ),
            cost_estimate=cost,
        )(x2d, w2d, b2d)
        return out2d.reshape(B, S, N)

    # ---------------- tiled K-reduction fallback -----------------------------
    tm_eff = min(tm, _round_up(M, sub))
    if tm_eff >= M:
        tm_eff = M
    tn_eff = N if N <= tn else tn                 # tn is a 128-multiple
    tk_eff = K if K <= tk else tk                 # tk is a 128-multiple

    K_pad = _round_up(K, tk_eff)
    if K_pad != K:
        # K must be zero-padded: garbage K columns would corrupt the reduction
        # (garbage M/N rows are safe: they are masked on the output write).
        x2d = jnp.pad(x2d, ((0, 0), (0, K_pad - K)))
        w2d = jnp.pad(w2d, ((0, K_pad - K), (0, 0)))

    grid = (_cdiv(M, tm_eff), _cdiv(N, tn_eff), K_pad // tk_eff)

    buf_bytes = (
        2 * (tm_eff * tk_eff + tk_eff * tn_eff) * act_b
        + 2 * tm_eff * tn_eff * out_b
        + tm_eff * tn_eff * 4      # f32 accumulator scratch
        + 2 * tn_eff * 4           # bias row
    )
    vmem_limit = int(min(max(buf_bytes * 5 // 4, 32 * 1024 * 1024), usable))

    out2d = pl.pallas_call(
        _dense_bias_tiled_kernel,
        out_shape=jax.ShapeDtypeStruct((M, N), out_dtype),
        grid_spec=pltpu.PrefetchScalarGridSpec(
            num_scalar_prefetch=0,
            grid=grid,
            in_specs=[
                pl.BlockSpec((tm_eff, tk_eff), lambda i, j, k: (i, k)),  # acts
                pl.BlockSpec((tk_eff, tn_eff), lambda i, j, k: (k, j)),  # weight
                pl.BlockSpec((1, tn_eff), lambda i, j, k: (0, j)),       # bias
            ],
            out_specs=pl.BlockSpec((tm_eff, tn_eff), lambda i, j, k: (i, j)),
            scratch_shapes=[pltpu.VMEM((tm_eff, tn_eff), jnp.float32)],
        ),
        compiler_params=pltpu.CompilerParams(
            dimension_semantics=("parallel", "parallel", "arbitrary"),
            vmem_limit_bytes=vmem_limit,
        ),
        cost_estimate=cost,
    )(x2d, w2d, b2d)
    return out2d.reshape(B, S, N)


# --------------------------- reference & test --------------------------------


def _reference(hidden_states, weight, bias, compute_dtype=jnp.bfloat16):
    x = hidden_states.astype(compute_dtype)
    w = weight.astype(compute_dtype)
    y = jnp.einsum("bsk,kn->bsn", x, w, preferred_element_type=jnp.float32)
    return (y + bias.astype(jnp.float32)).astype(hidden_states.dtype)


def _make_inputs(key, B, S, K, N, dtype=jnp.float32):
    k_hs, k_in, k_w, k_b = jax.random.split(key, 4)
    hidden_states = jax.random.normal(k_hs, (B, S, K), dtype=dtype)
    input_tensor = jax.random.normal(k_in, (B, S, N), dtype=dtype)
    # nn.Linear(K, N) init; PyTorch weight is [N, K]; we store it as [K, N].
    scale = 1.0 / float(K) ** 0.5
    weight = jax.random.uniform(k_w, (K, N), dtype=dtype, minval=-scale, maxval=scale)
    bias = jax.random.uniform(k_b, (N,), dtype=dtype, minval=-scale, maxval=scale)
    return hidden_states, input_tensor, weight, bias


if __name__ == "__main__":
    key = jax.random.PRNGKey(0)
    k1, k2, k3 = jax.random.split(key, 3)

    # Case 1: small ViT-like layer (intermediate=128, hidden=32), resident path.
    hs, it, w, b = _make_inputs(k1, B=2, S=8, K=128, N=32)
    out = jax.block_until_ready(vit_output_no_skip(hs, it, w, b))
    ref = _reference(hs, w, b)
    assert out.shape == (2, 8, 32)
    assert jnp.allclose(out, ref, atol=1e-2, rtol=1e-2), "mismatch (case 1)"

    # Case 2: ragged token count (M = 26, not a sublane multiple), resident path.
    hs2, it2, w2, b2 = _make_inputs(k2, B=2, S=13, K=256, N=64)
    out2 = jax.block_until_ready(vit_output_no_skip(hs2, it2, w2, b2))
    ref2 = _reference(hs2, w2, b2)
    assert out2.shape == (2, 13, 64)
    assert jnp.allclose(out2, ref2, atol=1e-2, rtol=1e-2), "mismatch (case 2)"

    # Case 3: exercise the tiled-K fallback (f32 accumulator + pl.when path).
    hs3, it3, w3, b3 = _make_inputs(k3, B=2, S=8, K=384, N=64)
    out3 = jax.block_until_ready(
        vit_output_no_skip(hs3, it3, w3, b3, tk=128, force_tiled=True)
    )
    ref3 = _reference(hs3, w3, b3)
    assert out3.shape == (2, 8, 64)
    assert jnp.allclose(out3, ref3, atol=1e-2, rtol=1e-2), "mismatch (case 3)"

    print("KERNEL_OK")
</pallas_src>

<mosaic_0001>
module attributes {stable_mosaic.version = 11 : i64} {
  func.func @_dense_bias_resident_kernel(%arg0: i32, %arg1: memref<16x128xbf16, #tpu.memory_space<vmem>>, %arg2: memref<128x32xbf16, #tpu.memory_space<vmem>>, %arg3: memref<1x32xf32, #tpu.memory_space<vmem>>, %arg4: memref<16x32xf32, #tpu.memory_space<vmem>>) attributes {dimension_semantics = [#tpu.dimension_semantics<parallel>], iteration_bounds = array<i64: 1>, scalar_prefetch = 0 : i64, scratch_operands = 0 : i64, tpu.core_type = #tpu.core_type<tc>, window_params = [{transform_indices = @transform_0, window_bounds = array<i64: 16, 128>}, {pipeline_mode = #tpu.pipeline_mode<synchronous>, transform_indices = @transform_1, window_bounds = array<i64: 128, 32>}, {pipeline_mode = #tpu.pipeline_mode<synchronous>, transform_indices = @transform_2, window_bounds = array<i64: 1, 32>}, {transform_indices = @transform_3, window_bounds = array<i64: 16, 32>}]} {
    %c0 = arith.constant 0 : index
    %c0_0 = arith.constant 0 : index
    %0 = vector.load %arg1[%c0, %c0_0] : memref<16x128xbf16, #tpu.memory_space<vmem>>, vector<16x128xbf16>
    %c0_1 = arith.constant 0 : index
    %c0_2 = arith.constant 0 : index
    %1 = vector.load %arg2[%c0_1, %c0_2] : memref<128x32xbf16, #tpu.memory_space<vmem>>, vector<128x32xbf16>
    %cst = arith.constant dense<0.000000e+00> : vector<16x32xf32>
    %2 = tpu.matmul %0, %1, %cst {dimension_numbers = #tpu.dot_dimension_numbers<[1], [0], [0], [1], [0, 0, 1, 1], [], []>} : vector<16x128xbf16>, vector<128x32xbf16>, vector<16x32xf32> -> vector<16x32xf32>
    %c0_3 = arith.constant 0 : index
    %c0_4 = arith.constant 0 : index
    %3 = vector.load %arg3[%c0_3, %c0_4] : memref<1x32xf32, #tpu.memory_space<vmem>>, vector<1x32xf32>
    %4 = vector.broadcast %3 : vector<1x32xf32> to vector<16x32xf32>
    %5 = arith.addf %2, %4 : vector<16x32xf32>
    %c0_5 = arith.constant 0 : index
    %c0_6 = arith.constant 0 : index
    %6 = vector.load %arg4[%c0_5, %c0_6] : memref<16x32xf32, #tpu.memory_space<vmem>>, vector<16x32xf32>
    tpu.vector_store %arg4[%c0_5, %c0_6], %5 {strides = array<i32>} : memref<16x32xf32, #tpu.memory_space<vmem>>, vector<16x32xf32>,
    return
  }
  func.func @transform_0(%arg0: i32) -> (i32, i32) {
    %c0_i32 = arith.constant 0 : i32
    %c0_i32_0 = arith.constant 0 : i32
    return %arg0, %c0_i32 : i32, i32
  }
  func.func @transform_1(%arg0: i32) -> (i32, i32) {
    %c0_i32 = arith.constant 0 : i32
    %c0_i32_0 = arith.constant 0 : i32
    %c0_i32_1 = arith.constant 0 : i32
    return %c0_i32, %c0_i32_0 : i32, i32
  }
  func.func @transform_2(%arg0: i32) -> (i32, i32) {
    %c0_i32 = arith.constant 0 : i32
    %c0_i32_0 = arith.constant 0 : i32
    %c0_i32_1 = arith.constant 0 : i32
    return %c0_i32, %c0_i32_0 : i32, i32
  }
  func.func @transform_3(%arg0: i32) -> (i32, i32) {
    %c0_i32 = arith.constant 0 : i32
    %c0_i32_0 = arith.constant 0 : i32
    return %arg0, %c0_i32 : i32, i32
  }
}

</mosaic_0001>

<llo_original>
// kernel: tpu_custom_call.1
$region0: #{tpu_custom_call.1}
  #allocation0 [shape = 'u32[]', space=smem, size = 0x4, offset = 0x4, fixed_abs, tag = 'smem constant byte address 0x4 - core index']
  #allocation1 [shape = 'u32[144,128]{1,0:T(1,128)}', space=vmem, size = 0x12000, scoped, tag = 'internal scratch']
  %s0 = inlined_call_operand.vmem [shape: bf16[16,128], index: 0, kind: input, shape index: {}]
  %s1 = inlined_call_operand.vmem [shape: bf16[128,32], index: 1, kind: input, shape index: {}]
  %s2 = inlined_call_operand.vmem [shape: f32[1,32], index: 2, kind: input, shape index: {}]
  %s3 = inlined_call_operand.hbm [shape: f32[16,32], index: 3, kind: output, shape index: {}]
  %s4 = sld [smem:[#allocation0]]
  $region22: #{tpu_custom_call.1} parent=0
    _
  %s6 = ssub.s32 1, %s4
  %s7 = scalar_select 0, %s6, %s4
  $region1: #{tpu_custom_call.1} parent=0
    #allocation2 [shape = 'u8[8192]{0}', space=vmem, size = 0x2000, scoped, tag = 'output window, operand 0, single buffered']
    #allocation3 [shape = 's32[1]{0}', space=sflag, size = 0x4, scoped, tag = 'scoped memory for tpu_custom_call.1']
    %8 = vsyncpa [#allocation3], 0
    // Predicated region
    $region2: #{tpu_custom_call.1} parent=1 // pred_check
      _
    $region3: #{tpu_custom_call.1} parent=1 // pred_check_branch
      %10 = sbr.rel (0) target = $region5
    $region4: #{tpu_custom_call.1} parent=1 // pred_region
      _
    $region5: #{tpu_custom_call.1} parent=1 // pred_fallthru
      _
    // Predicated region
    $region6: #{tpu_custom_call.1} parent=1 // pred_check
      _
    $region7: #{tpu_custom_call.1} parent=1 // pred_check_branch
      %12 = sbr.rel (0) target = $region9
    $region8: #{tpu_custom_call.1} parent=1 // pred_region
      _
    $region9: #{tpu_custom_call.1} parent=1 // pred_fallthru
      _
    // Predicated region
    $region10: #{tpu_custom_call.1} parent=1 // pred_check
      _
    $region11: #{tpu_custom_call.1} parent=1 // pred_check_branch
      %14 = sbr.rel (0) target = $region13
    $region12: #{tpu_custom_call.1} parent=1 // pred_region
      _
    $region13: #{tpu_custom_call.1} parent=1 // pred_fallthru
      _
    %v16 = vld [vmem:[%s0] sm:$0xf]
    %v17 = vld [vmem:[%s0 + $0x4] sm:$0xf]
    %v18 = vld [vmem:[%s1] sm:$0xf]
    %v19 = vld [vmem:[%s1 + $0x4] sm:$0xf]
    %v20 = vld [vmem:[%s1 + $0x8] sm:$0xf]
    %v21 = vld [vmem:[%s1 + $0xc] sm:$0xf]
    %v22 = vld [vmem:[%s1 + $0x10] sm:$0xf]
    %v23 = vld [vmem:[%s1 + $0x14] sm:$0xf]
    %v24 = vld [vmem:[%s1 + $0x18] sm:$0xf]
    %v25 = vld [vmem:[%s1 + $0x1c] sm:$0xf]
    %v26 = vld [vmem:[%s1 + $0x20] sm:$0xf]
    %v27 = vld [vmem:[%s1 + $0x24] sm:$0xf]
    %v28 = vld [vmem:[%s1 + $0x28] sm:$0xf]
    %v29 = vld [vmem:[%s1 + $0x2c] sm:$0xf]
    %v30 = vld [vmem:[%s1 + $0x30] sm:$0xf]
    %v31 = vld [vmem:[%s1 + $0x34] sm:$0xf]
    %v32 = vld [vmem:[%s1 + $0x38] sm:$0xf]
    %v33 = vld [vmem:[%s1 + $0x3c] sm:$0xf]
    %v34 = vld [vmem:[%s2] sm:$0x1]
    %v36 = vlaneseq
    %v37 = vshrl.u32 %v36, 7
    %v38 = vsub.s32 0, %v37
    %v39 = vrot.slane %v34, %v38
    %v43 = vunpack.c.l.b16 %v16
    %v44 = vunpack.c.l.b16 %v17
    %v45 = vpack.c.b16 %v44, %v43
    %v63 = vunpack.c.l.b16 %v18
    %v64 = vunpack.c.l.b16 %v19
    %v65 = vunpack.c.l.b16 %v20
    %v66 = vunpack.c.l.b16 %v21
    %v67 = vunpack.c.l.b16 %v22
    %v68 = vunpack.c.l.b16 %v23
    %v69 = vunpack.c.l.b16 %v24
    %v70 = vunpack.c.l.b16 %v25
    %v71 = vunpack.c.l.b16 %v26
    %v72 = vunpack.c.l.b16 %v27
    %v73 = vunpack.c.l.b16 %v28
    %v74 = vunpack.c.l.b16 %v29
    %v75 = vunpack.c.l.b16 %v30
    %v76 = vunpack.c.l.b16 %v31
    %v77 = vunpack.c.l.b16 %v32
    %v78 = vunpack.c.l.b16 %v33
    %v79 = vpack.c.b16 %v64, %v63
    %v80 = vpack.c.b16 %v66, %v65
    %v81 = vpack.c.b16 %v68, %v67
    %v82 = vpack.c.b16 %v70, %v69
    %v83 = vpack.c.b16 %v72, %v71
    %v84 = vpack.c.b16 %v74, %v73
    %v85 = vpack.c.b16 %v76, %v75
    %v86 = vpack.c.b16 %v78, %v77
    %95 = vmatprep.subr.bf16.mxu0 0
    %96 = vmatpush1.bf16.msra.mxu0 %v79
    %97 = vmatprep.subr.bf16.mxu0 0
    %98 = vmatpush1.bf16.msra.mxu0 %v80
    %99 = vmatprep.subr.bf16.mxu0 0
    %100 = vmatpush1.bf16.msra.mxu0 %v81
    %101 = vmatprep.subr.bf16.mxu0 0
    %102 = vmatpush1.bf16.msra.mxu0 %v82
    %103 = vmatprep.subr.bf16.mxu0 0
    %104 = vmatpush1.bf16.msra.mxu0 %v83
    %105 = vmatprep.subr.bf16.mxu0 0
    %106 = vmatpush1.bf16.msra.mxu0 %v84
    %107 = vmatprep.subr.bf16.mxu0 0
    %108 = vmatpush1.bf16.msra.mxu0 %v85
    %109 = vmatprep.subr.bf16.mxu0 0
    %110 = vmatpush1.bf16.msra.mxu0 %v86
    %111 = vmatprep.subr.bf16.mxu0 0
    %112 = vmatpush1.bf16.msra.mxu0 0
    %113 = vmatprep.subr.bf16.mxu0 0
    %114 = vmatpush1.bf16.msra.mxu0 0
    %115 = vmatprep.subr.bf16.mxu0 0
    %116 = vmatpush1.bf16.msra.mxu0 0
    %117 = vmatprep.subr.bf16.mxu0 0
    %118 = vmatpush1.bf16.msra.mxu0 0
    %119 = vmatprep.subr.bf16.mxu0 0
    %120 = vmatpush1.bf16.msra.mxu0 0
    %121 = vmatprep.subr.bf16.mxu0 0
    %122 = vmatpush1.bf16.msra.mxu0 0
    %123 = vmatprep.subr.bf16.mxu0 0
    %124 = vmatpush1.bf16.msra.mxu0 0
    %125 = vmatprep.subr.bf16.mxu0 0
    %126 = vmatpush1.bf16.msra.mxu0 0
    %127 = vmatprep.mubr.bf16.mxu0 0
    %128 = vmatmul.mubr.bf16.gmra.mrb[0].mxu0 %v45
    %v129 = vpop.f32.mrb[0].mxu0
    %v130 = vadd.f32 %v39, %v129
    %v131 = vpop.f32.mrb[0].mxu0
    %v132 = vpop.f32.mrb[0].mxu0
    %v133 = vadd.f32 %v39, %v132
    %v134 = vpop.f32.mrb[0].mxu0
    %135 = vdwg.mxu0
    %vm136 = vcmask 261120
    %137 = vst.msk [vmem:[#allocation2] sm:$0xff] %vm136, %v130
    %138 = vst.msk [vmem:[#allocation2 + $0x8] sm:$0xff] %vm136, %v133
    // Predicated region
    $region14: #{tpu_custom_call.1} parent=1 // pred_check
      _
    $region15: #{tpu_custom_call.1} parent=1 // pred_check_branch
      %140 = sbr.rel (0) target = $region17
    $region16: #{tpu_custom_call.1} parent=1 // pred_region
      %s142 = ssub.s32 256, 256
      %143 = vsyncadd [#allocation3], %s142
      %s144 = sshll.u32 [#allocation2], 4
      %s145 = int_to_ptr.vmem [resolvable:$true] %s144
      %150 = dma.vmem_to_hbm [thread:$0]  %s145, 256, %s3, [#allocation3], 128, 128, 8
    $region17: #{tpu_custom_call.1} parent=1 // pred_fallthru
      _
    // Predicated region
    $region18: #{tpu_custom_call.1} parent=1 // pred_check
      _
    $region19: #{tpu_custom_call.1} parent=1 // pred_check_branch
      %152 = sbr.rel (0) target = $region21
    $region20: #{tpu_custom_call.1} parent=1 // pred_region
      %153 = dma.done [#allocation3], 256
    $region21: #{tpu_custom_call.1} parent=1 // pred_fallthru
      _
    %154 = vsyncpa [#allocation3], 1

</llo_original>
